<compile_context>
chip_gen: v6e
topology: v6e:2x2x1
jax: 0.10.0
libtpu: 0.0.40
codegen_flags: <defaults>
</compile_context>

<pallas_src>
import functools

import jax
import jax.numpy as jnp
from jax.experimental import pallas as pl
from jax.experimental.pallas import tpu as pltpu

NEG_SLOPE = 0.01  # torch.nn.LeakyReLU default


def _leaky_relu(x):
    # 2 VALU ops (mul + max) instead of cmp + mul + select.
    return jnp.maximum(x, NEG_SLOPE * x)


def _round_up(x, m):
    return ((x + m - 1) // m) * m


def _choose_batch_tile(batch, block_batch):
    """Pick the batch tile: big enough to amortize the ~0.35us per-step overhead,
    16-aligned (bf16 sublane packing), and >=2 grid steps for large batches so the
    parallel batch axis can shard across v7x's two TensorCores."""
    bt = min(_round_up(block_batch, 16), _round_up(batch, 16))
    if batch >= 512:
        bt = min(bt, _round_up(pl.cdiv(batch, 2), 256))
    return max(bt, 16)


def mlp_kernel(x_ref, w1_ref, b1_ref, w2_ref, b2_ref, w3_ref, b3_ref, o_ref):
    # x_ref: (bt, in_dim) streamed activation tile.
    # w*_ref / b*_ref: full arrays, resident in VMEM (constant index_map -> DMA'd once).
    x = x_ref[...]
    mxu_dtype = w1_ref.dtype  # f32 or bf16 MXU inputs; accumulate in f32 always.

    h = jnp.dot(x.astype(mxu_dtype), w1_ref[...],
                preferred_element_type=jnp.float32) + b1_ref[...]
    h = _leaky_relu(h)

    h = jnp.dot(h.astype(mxu_dtype), w2_ref[...],
                preferred_element_type=jnp.float32) + b2_ref[...]
    h = _leaky_relu(h)

    out = jnp.dot(h.astype(mxu_dtype), w3_ref[...],
                  preferred_element_type=jnp.float32) + b3_ref[...]
    o_ref[...] = out.astype(o_ref.dtype)


@functools.partial(jax.jit, static_argnames=("block_batch", "use_bf16"))
def mlp_forward(x, w1, b1, w2, b2, w3, b3, *, block_batch=512, use_bf16=False):
    batch, in_dim = x.shape
    h1 = w1.shape[1]
    h2 = w2.shape[1]
    out_dim = w3.shape[1]

    # Biases as separate (1, h) resident inputs; kept in f32 (bias add / LeakyReLU in f32).
    b1 = b1.reshape(1, h1).astype(jnp.float32)
    b2 = b2.reshape(1, h2).astype(jnp.float32)
    b3 = b3.reshape(1, out_dim).astype(jnp.float32)

    if use_bf16:
        # Halve activation/weight DMA bytes and hit the native bf16 MXU path (v6e/v7x).
        # In production, store the params in bf16 to avoid the per-call cast.
        x = x.astype(jnp.bfloat16)
        w1, w2, w3 = (w.astype(jnp.bfloat16) for w in (w1, w2, w3))

    bt = _choose_batch_tile(batch, block_batch)
    padded_batch = _round_up(batch, bt)
    if padded_batch != batch:
        x = jnp.pad(x, ((0, padded_batch - batch), (0, 0)))  # zero rows, sliced off below
    grid = (padded_batch // bt,)

    itemsize = 2 if use_bf16 else 4
    flops = 2 * padded_batch * (in_dim * h1 + h1 * h2 + h2 * out_dim)
    bytes_accessed = (itemsize * (padded_batch * in_dim + w1.size + w2.size + w3.size)
                      + 4 * (b1.size + b2.size + b3.size + padded_batch * out_dim))

    resident = lambda i: (0, 0)  # weights/biases: same block for every grid step

    out = pl.pallas_call(
        mlp_kernel,
        out_shape=jax.ShapeDtypeStruct((padded_batch, out_dim), jnp.float32),
        grid=grid,
        in_specs=[
            pl.BlockSpec((bt, in_dim), lambda i: (i, 0)),  # streamed activation tiles
            pl.BlockSpec(w1.shape, resident),
            pl.BlockSpec(b1.shape, resident),
            pl.BlockSpec(w2.shape, resident),
            pl.BlockSpec(b2.shape, resident),
            pl.BlockSpec(w3.shape, resident),
            pl.BlockSpec(b3.shape, resident),
        ],
        # Unpadded output: last block dim == full array dim (legal). ~32x fewer HBM
        # output bytes than a 128-lane padded slab for out_dim=4.
        out_specs=pl.BlockSpec((bt, out_dim), lambda i: (i, 0)),
        compiler_params=pltpu.CompilerParams(
            dimension_semantics=("parallel",),  # batch tiles shard across v7x's 2 TCs
        ),
        cost_estimate=pl.CostEstimate(
            flops=flops, transcendentals=0, bytes_accessed=bytes_accessed),
    )(x, w1, b1, w2, b2, w3, b3)

    return out[:batch]


def init_linear_params(key, in_dim, out_dim):
    # Deterministic init mimicking torch.nn.Linear (uniform +/- 1/sqrt(in_dim)).
    kw, kb = jax.random.split(key)
    bound = 1.0 / jnp.sqrt(jnp.float32(in_dim))
    w = jax.random.uniform(kw, (in_dim, out_dim), jnp.float32, -bound, bound)
    b = jax.random.uniform(kb, (1, out_dim), jnp.float32, -bound, bound)
    return w, b


def _reference_forward(x, w1, b1, w2, b2, w3, b3):
    hp = jax.lax.Precision.HIGHEST  # true-f32 reference regardless of TPU default precision
    h = _leaky_relu(jnp.dot(x, w1, precision=hp) + b1.reshape(1, -1))
    h = _leaky_relu(jnp.dot(h, w2, precision=hp) + b2.reshape(1, -1))
    return jnp.dot(h, w3, precision=hp) + b3.reshape(1, -1)


if __name__ == "__main__":
    input_dim, n_hidden_1, n_hidden_2, output_dim = 8, 32, 32, 4
    batch = 512  # small data (~16 KiB) but enough for a 2-step batch grid (bt=256)

    key = jax.random.PRNGKey(0)
    kx, k1, k2, k3 = jax.random.split(key, 4)

    x = jax.random.normal(kx, (batch, input_dim), jnp.float32)
    w1, b1 = init_linear_params(k1, input_dim, n_hidden_1)
    w2, b2 = init_linear_params(k2, n_hidden_1, n_hidden_2)
    w3, b3 = init_linear_params(k3, n_hidden_2, output_dim)

    y_ref = _reference_forward(x, w1, b1, w2, b2, w3, b3)

    # f32 path (matches the torch/f32 math; tolerance covers MXU precision-mode deltas).
    y = mlp_forward(x, w1, b1, w2, b2, w3, b3)
    jax.block_until_ready(y)
    assert y.shape == (batch, output_dim), f"bad output shape {y.shape}"
    assert jnp.allclose(y, y_ref, atol=5e-3, rtol=5e-3), "f32 mismatch vs reference"

    # bf16-MXU path (recommended on v6e/v7x): looser tolerance vs the f32 reference.
    y16 = mlp_forward(x, w1, b1, w2, b2, w3, b3, use_bf16=True)
    jax.block_until_ready(y16)
    assert jnp.allclose(y16, y_ref, atol=7.5e-2, rtol=7.5e-2), "bf16 mismatch vs reference"

    # Ragged batch: exercises padding of the batch axis (single tile, sliced back).
    xs = x[:37]
    ys = mlp_forward(xs, w1, b1, w2, b2, w3, b3)
    jax.block_until_ready(ys)
    assert ys.shape == (37, output_dim), f"bad ragged output shape {ys.shape}"
    assert jnp.allclose(ys, y_ref[:37], atol=5e-3, rtol=5e-3), "ragged-batch mismatch"

    print("KERNEL_OK")
</pallas_src>

<mosaic_0001>
module attributes {stable_mosaic.version = 11 : i64} {
  func.func @mlp_kernel(%arg0: i32, %arg1: memref<256x8xf32, #tpu.memory_space<vmem>>, %arg2: memref<8x32xf32, #tpu.memory_space<vmem>>, %arg3: memref<1x32xf32, #tpu.memory_space<vmem>>, %arg4: memref<32x32xf32, #tpu.memory_space<vmem>>, %arg5: memref<1x32xf32, #tpu.memory_space<vmem>>, %arg6: memref<32x4xf32, #tpu.memory_space<vmem>>, %arg7: memref<1x4xf32, #tpu.memory_space<vmem>>, %arg8: memref<256x4xf32, #tpu.memory_space<vmem>>) attributes {dimension_semantics = [#tpu.dimension_semantics<parallel>], iteration_bounds = array<i64: 2>, scalar_prefetch = 0 : i64, scratch_operands = 0 : i64, tpu.core_type = #tpu.core_type<tc>, window_params = [{transform_indices = @transform_0, window_bounds = array<i64: 256, 8>}, {pipeline_mode = #tpu.pipeline_mode<synchronous>, transform_indices = @transform_1, window_bounds = array<i64: 8, 32>}, {pipeline_mode = #tpu.pipeline_mode<synchronous>, transform_indices = @transform_2, window_bounds = array<i64: 1, 32>}, {pipeline_mode = #tpu.pipeline_mode<synchronous>, transform_indices = @transform_3, window_bounds = array<i64: 32, 32>}, {pipeline_mode = #tpu.pipeline_mode<synchronous>, transform_indices = @transform_4, window_bounds = array<i64: 1, 32>}, {pipeline_mode = #tpu.pipeline_mode<synchronous>, transform_indices = @transform_5, window_bounds = array<i64: 32, 4>}, {pipeline_mode = #tpu.pipeline_mode<synchronous>, transform_indices = @transform_6, window_bounds = array<i64: 1, 4>}, {transform_indices = @transform_7, window_bounds = array<i64: 256, 4>}]} {
    %c0 = arith.constant 0 : index
    %c0_0 = arith.constant 0 : index
    %0 = vector.load %arg1[%c0, %c0_0] : memref<256x8xf32, #tpu.memory_space<vmem>>, vector<256x8xf32>
    %c0_1 = arith.constant 0 : index
    %c0_2 = arith.constant 0 : index
    %1 = vector.load %arg2[%c0_1, %c0_2] : memref<8x32xf32, #tpu.memory_space<vmem>>, vector<8x32xf32>
    %cst = arith.constant dense<0.000000e+00> : vector<256x32xf32>
    %2 = tpu.matmul %0, %1, %cst {dimension_numbers = #tpu.dot_dimension_numbers<[1], [0], [0], [1], [0, 0, 1, 1], [], []>} : vector<256x8xf32>, vector<8x32xf32>, vector<256x32xf32> -> vector<256x32xf32>
    %c0_3 = arith.constant 0 : index
    %c0_4 = arith.constant 0 : index
    %3 = vector.load %arg3[%c0_3, %c0_4] : memref<1x32xf32, #tpu.memory_space<vmem>>, vector<1x32xf32>
    %4 = vector.broadcast %3 : vector<1x32xf32> to vector<256x32xf32>
    %5 = arith.addf %2, %4 : vector<256x32xf32>
    %cst_5 = arith.constant 0.00999999977 : f32
    %6 = vector.broadcast %cst_5 : f32 to vector<256x32xf32>
    %7 = arith.mulf %6, %5 : vector<256x32xf32>
    %8 = arith.maximumf %5, %7 : vector<256x32xf32>
    %c0_6 = arith.constant 0 : index
    %c0_7 = arith.constant 0 : index
    %9 = vector.load %arg4[%c0_6, %c0_7] : memref<32x32xf32, #tpu.memory_space<vmem>>, vector<32x32xf32>
    %cst_8 = arith.constant dense<0.000000e+00> : vector<256x32xf32>
    %10 = tpu.matmul %8, %9, %cst_8 {dimension_numbers = #tpu.dot_dimension_numbers<[1], [0], [0], [1], [0, 0, 1, 1], [], []>} : vector<256x32xf32>, vector<32x32xf32>, vector<256x32xf32> -> vector<256x32xf32>
    %c0_9 = arith.constant 0 : index
    %c0_10 = arith.constant 0 : index
    %11 = vector.load %arg5[%c0_9, %c0_10] : memref<1x32xf32, #tpu.memory_space<vmem>>, vector<1x32xf32>
    %12 = vector.broadcast %11 : vector<1x32xf32> to vector<256x32xf32>
    %13 = arith.addf %10, %12 : vector<256x32xf32>
    %cst_11 = arith.constant 0.00999999977 : f32
    %14 = vector.broadcast %cst_11 : f32 to vector<256x32xf32>
    %15 = arith.mulf %14, %13 : vector<256x32xf32>
    %16 = arith.maximumf %13, %15 : vector<256x32xf32>
    %c0_12 = arith.constant 0 : index
    %c0_13 = arith.constant 0 : index
    %17 = vector.load %arg6[%c0_12, %c0_13] : memref<32x4xf32, #tpu.memory_space<vmem>>, vector<32x4xf32>
    %cst_14 = arith.constant dense<0.000000e+00> : vector<256x4xf32>
    %18 = tpu.matmul %16, %17, %cst_14 {dimension_numbers = #tpu.dot_dimension_numbers<[1], [0], [0], [1], [0, 0, 1, 1], [], []>} : vector<256x32xf32>, vector<32x4xf32>, vector<256x4xf32> -> vector<256x4xf32>
    %c0_15 = arith.constant 0 : index
    %c0_16 = arith.constant 0 : index
    %19 = vector.load %arg7[%c0_15, %c0_16] : memref<1x4xf32, #tpu.memory_space<vmem>>, vector<1x4xf32>
    %20 = vector.broadcast %19 : vector<1x4xf32> to vector<256x4xf32>
    %21 = arith.addf %18, %20 : vector<256x4xf32>
    %c0_17 = arith.constant 0 : index
    %c0_18 = arith.constant 0 : index
    %22 = vector.load %arg8[%c0_17, %c0_18] : memref<256x4xf32, #tpu.memory_space<vmem>>, vector<256x4xf32>
    tpu.vector_store %arg8[%c0_17, %c0_18], %21 {strides = array<i32>} : memref<256x4xf32, #tpu.memory_space<vmem>>, vector<256x4xf32>,
    return
  }
  func.func @transform_0(%arg0: i32) -> (i32, i32) {
    %c0_i32 = arith.constant 0 : i32
    %c0_i32_0 = arith.constant 0 : i32
    return %arg0, %c0_i32 : i32, i32
  }
  func.func @transform_1(%arg0: i32) -> (i32, i32) {
    %c0_i32 = arith.constant 0 : i32
    %c0_i32_0 = arith.constant 0 : i32
    %c0_i32_1 = arith.constant 0 : i32
    return %c0_i32, %c0_i32_0 : i32, i32
  }
  func.func @transform_2(%arg0: i32) -> (i32, i32) {
    %c0_i32 = arith.constant 0 : i32
    %c0_i32_0 = arith.constant 0 : i32
    %c0_i32_1 = arith.constant 0 : i32
    return %c0_i32, %c0_i32_0 : i32, i32
  }
  func.func @transform_3(%arg0: i32) -> (i32, i32) {
    %c0_i32 = arith.constant 0 : i32
    %c0_i32_0 = arith.constant 0 : i32
    %c0_i32_1 = arith.constant 0 : i32
    return %c0_i32, %c0_i32_0 : i32, i32
  }
  func.func @transform_4(%arg0: i32) -> (i32, i32) {
    %c0_i32 = arith.constant 0 : i32
    %c0_i32_0 = arith.constant 0 : i32
    %c0_i32_1 = arith.constant 0 : i32
    return %c0_i32, %c0_i32_0 : i32, i32
  }
  func.func @transform_5(%arg0: i32) -> (i32, i32) {
    %c0_i32 = arith.constant 0 : i32
    %c0_i32_0 = arith.constant 0 : i32
    %c0_i32_1 = arith.constant 0 : i32
    return %c0_i32, %c0_i32_0 : i32, i32
  }
  func.func @transform_6(%arg0: i32) -> (i32, i32) {
    %c0_i32 = arith.constant 0 : i32
    %c0_i32_0 = arith.constant 0 : i32
    %c0_i32_1 = arith.constant 0 : i32
    return %c0_i32, %c0_i32_0 : i32, i32
  }
  func.func @transform_7(%arg0: i32) -> (i32, i32) {
    %c0_i32 = arith.constant 0 : i32
    %c0_i32_0 = arith.constant 0 : i32
    return %arg0, %c0_i32 : i32, i32
  }
}

</mosaic_0001>

<llo_original>
// kernel: mlp_forward.1
$region0: #{mlp_forward.1}
  #allocation0 [shape = 'u32[]', space=smem, size = 0x4, offset = 0x4, fixed_abs, tag = 'smem constant byte address 0x4 - core index']
  #allocation1 [shape = 'u32[144,128]{1,0:T(1,128)}', space=vmem, size = 0x12000, scoped, tag = 'internal scratch']
  %s0 = inlined_call_operand.vmem [shape: f32[512,8], index: 0, kind: input, shape index: {}]
  %s1 = inlined_call_operand.vmem [shape: f32[8,32], index: 1, kind: input, shape index: {}]
  %s2 = inlined_call_operand.vmem [shape: f32[1,32], index: 2, kind: input, shape index: {}]
  %s3 = inlined_call_operand.vmem [shape: f32[32,32], index: 3, kind: input, shape index: {}]
  %s4 = inlined_call_operand.vmem [shape: f32[1,32], index: 4, kind: input, shape index: {}]
  %s5 = inlined_call_operand.vmem [shape: f32[32,4], index: 5, kind: input, shape index: {}]
  %s6 = inlined_call_operand.vmem [shape: f32[1,4], index: 6, kind: input, shape index: {}]
  %s7 = inlined_call_operand.vmem [shape: f32[512,4], index: 7, kind: output, shape index: {}]
  %s8 = sld [smem:[#allocation0]]
  $region61: #{mlp_forward.1} parent=0
    _
  %s10 = ssub.s32 1, %s8
  %s11 = scalar_select 0, %s10, %s8
  loop: start=0, step=1, limit=4
  $region2: #{mlp_forward.1} parent=0 // loop_pre_header
    _
  $region3: #{mlp_forward.1} parent=0 // loop_header
    %s13 = sphi 0, %s17
    %p14 = scmp.ge.s32.totalorder %s13, 4
    %s23 = sphi 0, %s25
    %s26 = sphi 0, %s23
    %s27 = sphi 0, %s26
    %s43 = sphi 0, %s27
    %s47 = sphi 0, %s47
    %s49 = sphi 0, %s47
    %s50 = sphi 0, %s49
    %s64 = sphi 0, %s50
    %s68 = sphi 0, %s68
    %s70 = sphi 0, %s68
    %s71 = sphi 0, %s70
    %s85 = sphi 0, %s71
    %s89 = sphi 0, %s89
    %s91 = sphi 0, %s89
    %s92 = sphi 0, %s91
    %s106 = sphi 0, %s92
    %s110 = sphi 0, %s110
    %s112 = sphi 0, %s110
    %s113 = sphi 0, %s112
    %s127 = sphi 0, %s113
    %s131 = sphi 0, %s131
    %s133 = sphi 0, %s131
    %s134 = sphi 0, %s133
    %s148 = sphi 0, %s134
    %s152 = sphi 0, %s152
    %s154 = sphi 0, %s152
    %s155 = sphi 0, %s154
    %s169 = sphi 0, %s155
    %s175 = sphi 0, %s177
    %s178 = sphi 0, %s175
    %s179 = sphi 0, %s178
    %s195 = sphi 0, %s179
  $region4: #{mlp_forward.1} parent=0 // loop_header_branch
    %16 = sbr.rel (%p14) target = $region8
  $region5: #{mlp_forward.1} parent=0 // loop_body
    %s18 = ssub.s32 %s13, 1
    %s19 = ssub.s32 %s13, 2
    %s20 = sadd.s32 %s13, 1
    %s21 = ssub.s32 %s13, %s20
    %p22 = scmp.eq.s32.totalorder %s21, 0
    %s24 = sadd.s32 %s23, 1
    %s25 = scalar_select %p22, %s23, %s24
    %p28 = pneg %p22
    %p29 = scmp.eq.s32.totalorder %s13, 1
    %p30 = por %p28, %p29
    %p31 = scmp.ne.s32.totalorder %s23, %s26
    %p32 = scmp.eq.s32.totalorder %s13, 0
    %p33 = por %p31, %p32
    %p34 = scmp.ne.s32.totalorder %s23, %s26
    %p35 = scmp.eq.s32.totalorder %s18, 1
    %p36 = por %p34, %p35
    %p37 = scmp.ne.s32.totalorder %s26, %s27
    %p38 = scmp.eq.s32.totalorder %s18, 0
    %p39 = por %p37, %p38
    %p40 = scmp.ne.s32.totalorder %s26, %s27
    %p41 = scmp.eq.s32.totalorder %s19, 1
    %p42 = por %p40, %p41
    %p44 = scmp.ne.s32.totalorder %s27, %s43
    %p45 = scmp.eq.s32.totalorder %s19, 0
    %p46 = por %p44, %p45
    %s48 = sadd.s32 %s47, 1
    %p51 = scmp.eq.s32.totalorder %s13, 1
    %p52 = scmp.ne.s32.totalorder %s47, %s49
    %p53 = scmp.eq.s32.totalorder %s13, 0
    %p54 = por %p52, %p53
    %p55 = scmp.ne.s32.totalorder %s47, %s49
    %p56 = scmp.eq.s32.totalorder %s18, 1
    %p57 = por %p55, %p56
    %p58 = scmp.ne.s32.totalorder %s49, %s50
    %p59 = scmp.eq.s32.totalorder %s18, 0
    %p60 = por %p58, %p59
    %p61 = scmp.ne.s32.totalorder %s49, %s50
    %p62 = scmp.eq.s32.totalorder %s19, 1
    %p63 = por %p61, %p62
    %p65 = scmp.ne.s32.totalorder %s50, %s64
    %p66 = scmp.eq.s32.totalorder %s19, 0
    %p67 = por %p65, %p66
    %s69 = sadd.s32 %s68, 1
    %p72 = scmp.eq.s32.totalorder %s13, 1
    %p73 = scmp.ne.s32.totalorder %s68, %s70
    %p74 = scmp.eq.s32.totalorder %s13, 0
    %p75 = por %p73, %p74
    %p76 = scmp.ne.s32.totalorder %s68, %s70
    %p77 = scmp.eq.s32.totalorder %s18, 1
    %p78 = por %p76, %p77
    %p79 = scmp.ne.s32.totalorder %s70, %s71
    %p80 = scmp.eq.s32.totalorder %s18, 0
    %p81 = por %p79, %p80
    %p82 = scmp.ne.s32.totalorder %s70, %s71
    %p83 = scmp.eq.s32.totalorder %s19, 1
    %p84 = por %p82, %p83
    %p86 = scmp.ne.s32.totalorder %s71, %s85
    %p87 = scmp.eq.s32.totalorder %s19, 0
    %p88 = por %p86, %p87
    %s90 = sadd.s32 %s89, 1
    %p93 = scmp.eq.s32.totalorder %s13, 1
    %p94 = scmp.ne.s32.totalorder %s89, %s91
    %p95 = scmp.eq.s32.totalorder %s13, 0
    %p96 = por %p94, %p95
    %p97 = scmp.ne.s32.totalorder %s89, %s91
    %p98 = scmp.eq.s32.totalorder %s18, 1
    %p99 = por %p97, %p98
    %p100 = scmp.ne.s32.totalorder %s91, %s92
    %p101 = scmp.eq.s32.totalorder %s18, 0
    %p102 = por %p100, %p101
    %p103 = scmp.ne.s32.totalorder %s91, %s92
    %p104 = scmp.eq.s32.totalorder %s19, 1
    %p105 = por %p103, %p104
    %p107 = scmp.ne.s32.totalorder %s92, %s106
    %p108 = scmp.eq.s32.totalorder %s19, 0
    %p109 = por %p107, %p108
    %s111 = sadd.s32 %s110, 1
    %p114 = scmp.eq.s32.totalorder %s13, 1
    %p115 = scmp.ne.s32.totalorder %s110, %s112
    %p116 = scmp.eq.s32.totalorder %s13, 0
    %p117 = por %p115, %p116
    %p118 = scmp.ne.s32.totalorder %s110, %s112
    %p119 = scmp.eq.s32.totalorder %s18, 1
    %p120 = por %p118, %p119
    %p121 = scmp.ne.s32.totalorder %s112, %s113
    %p122 = scmp.eq.s32.totalorder %s18, 0
    %p123 = por %p121, %p122
    %p124 = scmp.ne.s32.totalorder %s112, %s113
    %p125 = scmp.eq.s32.totalorder %s19, 1
    %p126 = por %p124, %p125
    %p128 = scmp.ne.s32.totalorder %s113, %s127
    %p129 = scmp.eq.s32.totalorder %s19, 0
    %p130 = por %p128, %p129
    %s132 = sadd.s32 %s131, 1
    %p135 = scmp.eq.s32.totalorder %s13, 1
    %p136 = scmp.ne.s32.totalorder %s131, %s133
    %p137 = scmp.eq.s32.totalorder %s13, 0
    %p138 = por %p136, %p137
    %p139 = scmp.ne.s32.totalorder %s131, %s133
    %p140 = scmp.eq.s32.totalorder %s18, 1
    %p141 = por %p139, %p140
    %p142 = scmp.ne.s32.totalorder %s133, %s134
    %p143 = scmp.eq.s32.totalorder %s18, 0
    %p144 = por %p142, %p143
    %p145 = scmp.ne.s32.totalorder %s133, %s134
    %p146 = scmp.eq.s32.totalorder %s19, 1
    %p147 = por %p145, %p146
    %p149 = scmp.ne.s32.totalorder %s134, %s148
    %p150 = scmp.eq.s32.totalorder %s19, 0
    %p151 = por %p149, %p150
    %s153 = sadd.s32 %s152, 1
    %p156 = scmp.eq.s32.totalorder %s13, 1
    %p157 = scmp.ne.s32.totalorder %s152, %s154
    %p158 = scmp.eq.s32.totalorder %s13, 0
    %p159 = por %p157, %p158
    %p160 = scmp.ne.s32.totalorder %s152, %s154
    %p161 = scmp.eq.s32.totalorder %s18, 1
    %p162 = por %p160, %p161
    %p163 = scmp.ne.s32.totalorder %s154, %s155
    %p164 = scmp.eq.s32.totalorder %s18, 0
    %p165 = por %p163, %p164
    %p166 = scmp.ne.s32.totalorder %s154, %s155
    %p167 = scmp.eq.s32.totalorder %s19, 1
    %p168 = por %p166, %p167
    %p170 = scmp.ne.s32.totalorder %s155, %s169
    %p171 = scmp.eq.s32.totalorder %s19, 0
    %p172 = por %p170, %p171
    %s173 = ssub.s32 %s13, %s20
    %p174 = scmp.eq.s32.totalorder %s173, 0
    %s176 = sadd.s32 %s175, 1
    %s177 = scalar_select %p174, %s175, %s176
    %p180 = pneg %p174
    %p181 = scmp.eq.s32.totalorder %s13, 1
    %p182 = por %p180, %p181
    %p183 = scmp.ne.s32.totalorder %s175, %s178
    %p184 = scmp.eq.s32.totalorder %s13, 0
    %p185 = por %p183, %p184
    %p186 = scmp.ne.s32.totalorder %s175, %s178
    %p187 = scmp.eq.s32.totalorder %s18, 1
    %p188 = por %p186, %p187
    %p189 = scmp.ne.s32.totalorder %s178, %s179
    %p190 = scmp.eq.s32.totalorder %s18, 0
    %p191 = por %p189, %p190
    %p192 = scmp.ne.s32.totalorder %s178, %s179
    %p193 = scmp.eq.s32.totalorder %s19, 1
    %p194 = por %p192, %p193
    %p196 = scmp.ne.s32.totalorder %s179, %s195
    %p197 = scmp.eq.s32.totalorder %s19, 0
    %p198 = por %p196, %p197
    %p199 = scmp.le.s32.totalorder 1, %s13
    %p200 = scmp.lt.s32.totalorder %s13, 3
    %p201 = pnand %p199, %p200
    %p202 = pneg %p201
    // Predicated region
    $region9: #{mlp_forward.1} parent=5 // pred_check
      _
    $region10: #{mlp_forward.1} parent=5 // pred_check_branch
      %204 = sbr.rel (%p201) target = $region12
    $region11: #{mlp_forward.1} parent=5 // pred_region
      %s205 = ssub.s32 %s13, 1
      // Predicated region
      $region13: #{mlp_forward.1} parent=11 // pred_check
        %p206 = pneg %p60
      $region14: #{mlp_forward.1} parent=11 // pred_check_branch
        %208 = sbr.rel (%p206) target = $region16
      $region15: #{mlp_forward.1} parent=11 // pred_region
        _
      $region16: #{mlp_forward.1} parent=11 // pred_fallthru
        _
      // Predicated region
      $region17: #{mlp_forward.1} parent=11 // pred_check
        %p209 = pneg %p81
      $region18: #{mlp_forward.1} parent=11 // pred_check_branch
        %211 = sbr.rel (%p209) target = $region20
      $region19: #{mlp_forward.1} parent=11 // pred_region
        _
      $region20: #{mlp_forward.1} parent=11 // pred_fallthru
        _
      // Predicated region
      $region21: #{mlp_forward.1} parent=11 // pred_check
        %p212 = pneg %p102
      $region22: #{mlp_forward.1} parent=11 // pred_check_branch
        %214 = sbr.rel (%p212) target = $region24
      $region23: #{mlp_forward.1} parent=11 // pred_region
        _
      $region24: #{mlp_forward.1} parent=11 // pred_fallthru
        _
      // Predicated region
      $region25: #{mlp_forward.1} parent=11 // pred_check
        %p215 = pneg %p123
      $region26: #{mlp_forward.1} parent=11 // pred_check_branch
        %217 = sbr.rel (%p215) target = $region28
      $region27: #{mlp_forward.1} parent=11 // pred_region
        _
      $region28: #{mlp_forward.1} parent=11 // pred_fallthru
        _
      // Predicated region
      $region29: #{mlp_forward.1} parent=11 // pred_check
        %p218 = pneg %p144
      $region30: #{mlp_forward.1} parent=11 // pred_check_branch
        %220 = sbr.rel (%p218) target = $region32
      $region31: #{mlp_forward.1} parent=11 // pred_region
        _
      $region32: #{mlp_forward.1} parent=11 // pred_fallthru
        _
      // Predicated region
      $region33: #{mlp_forward.1} parent=11 // pred_check
        %p221 = pneg %p165
      $region34: #{mlp_forward.1} parent=11 // pred_check_branch
        %223 = sbr.rel (%p221) target = $region36
      $region35: #{mlp_forward.1} parent=11 // pred_region
        _
      $region36: #{mlp_forward.1} parent=11 // pred_fallthru
        _
    $region12: #{mlp_forward.1} parent=5 // pred_fallthru
      _
    %p224 = scmp.lt.s32.totalorder %s13, 2
    // Predicated region
    $region37: #{mlp_forward.1} parent=5 // pred_check
      %p225 = pneg %p224
    $region38: #{mlp_forward.1} parent=5 // pred_check_branch
      %227 = sbr.rel (%p225) target = $region40
    $region39: #{mlp_forward.1} parent=5 // pred_region
      // Predicated region
      $region41: #{mlp_forward.1} parent=39 // pred_check
        %p228 = pneg %p33
      $region42: #{mlp_forward.1} parent=39 // pred_check_branch
        %230 = sbr.rel (%p228) target = $region44
      $region43: #{mlp_forward.1} parent=39 // pred_region
        %s231 = smul.u32 32, %s13
        %p232 = scmp.lt.s32.totalorder %s231, 63
        %s233 = scalar_select %p232, %s231, 63
        %s234 = smul.addr %s233, 8
        %s235 = scalar_lea.vmem %s0, %s234
        %s236 = smul.u32 32, %s13
      $region44: #{mlp_forward.1} parent=39 // pred_fallthru
        _
    $region40: #{mlp_forward.1} parent=5 // pred_fallthru
      _
    %p237 = scmp.le.s32.totalorder 1, %s13
    %p238 = scmp.lt.s32.totalorder %s13, 3
    %p239 = pnand %p237, %p238
    %p240 = pneg %p239
    // Predicated region
    $region45: #{mlp_forward.1} parent=5 // pred_check
      _
    $region46: #{mlp_forward.1} parent=5 // pred_check_branch
      %242 = sbr.rel (%p239) target = $region48
    $region47: #{mlp_forward.1} parent=5 // pred_region
      %s243 = ssub.s32 %s13, 1
      %s244 = smul.u32 32, %s18
      %p245 = scmp.lt.s32.totalorder %s244, 63
      %s246 = scalar_select %p245, %s244, 63
      %s247 = smul.addr %s246, 8
      %s248 = scalar_lea.vmem %s0, %s247
      %p249 = pneg %p39
      %p250 = pneg %p36
      %p251 = pneg %p60
      %p252 = pneg %p57
      %p253 = pneg %p81
      %p254 = pneg %p78
      %p255 = pneg %p102
      %p256 = pneg %p99
      %p257 = pneg %p123
      %p258 = pneg %p120
      %p259 = pneg %p144
      %p260 = pneg %p141
      %p261 = pneg %p165
      %p262 = pneg %p162
      %p263 = pneg %p191
      %p264 = pneg %p188
      %s265 = smul.u32 32, %s18
      %p266 = scmp.lt.s32.totalorder %s265, 63
      %s267 = scalar_select %p266, %s265, 63
      %s268 = smul.addr %s267, 8
      %s269 = scalar_lea.vmem %s7, %s268
      %s270 = smul.u32 32, %s18
      %p271 = scmp.lt.s32.totalorder %s270, 63
      %s272 = scalar_select %p271, %s270, 63
      %s273 = smul.addr %s272, 8
      %s274 = scalar_lea.vmem %s0, %s273
      %s275 = smul.u32 32, %s18
      %s276 = smul.u32 32, %s18
      %p277 = scmp.lt.s32.totalorder %s276, 63
      %s278 = scalar_select %p277, %s276, 63
      %s279 = smul.addr %s278, 8
      %s280 = scalar_lea.vmem %s7, %s279
      %s281 = smul.u32 32, %s18
      %v282 = vld [vmem:[%s274] sm:$0xff]
      %v283 = vld [vmem:[%s274 + $0x8] sm:$0xff]
      %v284 = vld [vmem:[%s274 + $0x10] sm:$0xff]
      %v285 = vld [vmem:[%s274 + $0x18] sm:$0xff]
      %v286 = vld [vmem:[%s274 + $0x20] sm:$0xff]
      %v287 = vld [vmem:[%s274 + $0x28] sm:$0xff]
      %v288 = vld [vmem:[%s274 + $0x30] sm:$0xff]
      %v289 = vld [vmem:[%s274 + $0x38] sm:$0xff]
      %v290 = vld [vmem:[%s274 + $0x40] sm:$0xff]
      %v291 = vld [vmem:[%s274 + $0x48] sm:$0xff]
      %v292 = vld [vmem:[%s274 + $0x50] sm:$0xff]
      %v293 = vld [vmem:[%s274 + $0x58] sm:$0xff]
      %v294 = vld [vmem:[%s274 + $0x60] sm:$0xff]
      %v295 = vld [vmem:[%s274 + $0x68] sm:$0xff]
      %v296 = vld [vmem:[%s274 + $0x70] sm:$0xff]
      %v297 = vld [vmem:[%s274 + $0x78] sm:$0xff]
      %v298 = vld [vmem:[%s274 + $0x80] sm:$0xff]
      %v299 = vld [vmem:[%s274 + $0x88] sm:$0xff]
      %v300 = vld [vmem:[%s274 + $0x90] sm:$0xff]
      %v301 = vld [vmem:[%s274 + $0x98] sm:$0xff]
      %v302 = vld [vmem:[%s274 + $0xa0] sm:$0xff]
      %v303 = vld [vmem:[%s274 + $0xa8] sm:$0xff]
      %v304 = vld [vmem:[%s274 + $0xb0] sm:$0xff]
      %v305 = vld [vmem:[%s274 + $0xb8] sm:$0xff]
      %v306 = vld [vmem:[%s274 + $0xc0] sm:$0xff]
      %v307 = vld [vmem:[%s274 + $0xc8] sm:$0xff]
      %v308 = vld [vmem:[%s274 + $0xd0] sm:$0xff]
      %v309 = vld [vmem:[%s274 + $0xd8] sm:$0xff]
      %v310 = vld [vmem:[%s274 + $0xe0] sm:$0xff]
      %v311 = vld [vmem:[%s274 + $0xe8] sm:$0xff]
      %v312 = vld [vmem:[%s274 + $0xf0] sm:$0xff]
      %v313 = vld [vmem:[%s274 + $0xf8] sm:$0xff]
      %v314 = vld [vmem:[%s1] sm:$0xff]
      %v315 = vld [vmem:[%s2] sm:$0x1]
      %v317 = vlaneseq
      %v318 = vshrl.u32 %v317, 7
      %v319 = vsub.s32 0, %v318
      %v320 = vrot.slane %v315, %v319
      %vm322 = vcmask 64512
      %v324 = vsel %vm322, %v282, 0
      %v327 = vsel %vm322, %v283, 0
      %v330 = vsel %vm322, %v284, 0
      %v333 = vsel %vm322, %v285, 0
      %v336 = vsel %vm322, %v286, 0
      %v339 = vsel %vm322, %v287, 0
      %v342 = vsel %vm322, %v288, 0
      %v345 = vsel %vm322, %v289, 0
      %v348 = vsel %vm322, %v290, 0
      %v351 = vsel %vm322, %v291, 0
      %v354 = vsel %vm322, %v292, 0
      %v357 = vsel %vm322, %v293, 0
      %v360 = vsel %vm322, %v294, 0
      %v363 = vsel %vm322, %v295, 0
      %v366 = vsel %vm322, %v296, 0
      %v369 = vsel %vm322, %v297, 0
      %v372 = vsel %vm322, %v298, 0
      %v375 = vsel %vm322, %v299, 0
      %v378 = vsel %vm322, %v300, 0
      %v381 = vsel %vm322, %v301, 0
      %v384 = vsel %vm322, %v302, 0
      %v387 = vsel %vm322, %v303, 0
      %v390 = vsel %vm322, %v304, 0
      %v393 = vsel %vm322, %v305, 0
      %v396 = vsel %vm322, %v306, 0
      %v399 = vsel %vm322, %v307, 0
      %v402 = vsel %vm322, %v308, 0
      %v405 = vsel %vm322, %v309, 0
      %v408 = vsel %vm322, %v310, 0
      %v411 = vsel %vm322, %v311, 0
      %v414 = vsel %vm322, %v312, 0
      %v417 = vsel %vm322, %v313, 0
      %419 = vmatprep.subr.mxu0 0.0
      %420 = vmatpush1.msra.mxu0 0.0
      %421 = vmatprep.subr.mxu0 0.0
      %422 = vmatpush1.msra.mxu0 0.0
      %423 = vmatprep.subr.mxu0 0.0
      %424 = vmatpush1.msra.mxu0 0.0
      %425 = vmatprep.subr.mxu0 0.0
      %426 = vmatpush1.msra.mxu0 0.0
      %427 = vmatprep.subr.mxu0 0.0
      %428 = vmatpush1.msra.mxu0 0.0
      %429 = vmatprep.subr.mxu0 0.0
      %430 = vmatpush1.msra.mxu0 0.0
      %431 = vmatprep.subr.mxu0 0.0
      %432 = vmatpush1.msra.mxu0 0.0
      %433 = vmatprep.subr.mxu0 0.0
      %434 = vmatpush1.msra.mxu0 0.0
      %435 = vmatprep.subr.mxu0 0.0
      %436 = vmatpush1.msra.mxu0 0.0
      %437 = vmatprep.subr.mxu0 0.0
      %438 = vmatpush1.msra.mxu0 0.0
      %439 = vmatprep.subr.mxu0 0.0
      %440 = vmatpush1.msra.mxu0 0.0
      %441 = vmatprep.subr.mxu0 0.0
      %442 = vmatpush1.msra.mxu0 0.0
      %443 = vmatprep.subr.mxu0 0.0
      %444 = vmatpush1.msra.mxu0 0.0
      %445 = vmatprep.subr.mxu0 0.0
      %446 = vmatpush1.msra.mxu0 0.0
      %447 = vmatprep.subr.mxu0 0.0
      %448 = vmatpush1.msra.mxu0 0.0
      %449 = vmatprep.subr.mxu0 0.0
      %450 = vmatpush1.msra.mxu0 %v314
      %451 = vmatprep.subr.mxu0 0.0
      %452 = vmatpush2.msra.mxu0 0.0
      %453 = vmatprep.subr.mxu0 0.0
      %454 = vmatpush2.msra.mxu0 0.0
      %455 = vmatprep.subr.mxu0 0.0
      %456 = vmatpush2.msra.mxu0 0.0
      %457 = vmatprep.subr.mxu0 0.0
      %458 = vmatpush2.msra.mxu0 0.0
      %459 = vmatprep.subr.mxu0 0.0
      %460 = vmatpush2.msra.mxu0 0.0
      %461 = vmatprep.subr.mxu0 0.0
      %462 = vmatpush2.msra.mxu0 0.0
      %463 = vmatprep.subr.mxu0 0.0
      %464 = vmatpush2.msra.mxu0 0.0
      %465 = vmatprep.subr.mxu0 0.0
      %466 = vmatpush2.msra.mxu0 0.0
      %467 = vmatprep.subr.mxu0 0.0
      %468 = vmatpush2.msra.mxu0 0.0
      %469 = vmatprep.subr.mxu0 0.0
      %470 = vmatpush2.msra.mxu0 0.0
      %471 = vmatprep.subr.mxu0 0.0
      %472 = vmatpush2.msra.mxu0 0.0
      %473 = vmatprep.subr.mxu0 0.0
      %474 = vmatpush2.msra.mxu0 0.0
      %475 = vmatprep.subr.mxu0 0.0
      %476 = vmatpush2.msra.mxu0 0.0
      %477 = vmatprep.subr.mxu0 0.0
      %478 = vmatpush2.msra.mxu0 0.0
      %479 = vmatprep.subr.mxu0 0.0
      %480 = vmatpush2.msra.mxu0 0.0
      %481 = vmatprep.subr.mxu0 0.0
      %482 = vmatpush2.msra.mxu0 0.0
      %483 = vmatprep.mubr.f32.mxu0 0.0
      %484 = vmatmul.mubr.f32.gmra.mxu0 %v324
      %v485 = vpop.f32.mrf.mxu0
      %v486 = vadd.f32 %v320, %v485
      %v487 = vpop.f32.mrf.mxu0
      %488 = vmatprep.mubr.f32.mxu0 0.0
      %489 = vmatmul.mubr.f32.gmra.mxu0 %v327
      %v490 = vpop.f32.mrf.mxu0
      %v491 = vadd.f32 %v320, %v490
      %v492 = vpop.f32.mrf.mxu0
      %493 = vmatprep.mubr.f32.mxu0 0.0
      %494 = vmatmul.mubr.f32.gmra.mxu0 %v330
      %v495 = vpop.f32.mrf.mxu0
      %v496 = vadd.f32 %v320, %v495
      %v497 = vpop.f32.mrf.mxu0
      %498 = vmatprep.mubr.f32.mxu0 0.0
      %499 = vmatmul.mubr.f32.gmra.mxu0 %v333
      %v500 = vpop.f32.mrf.mxu0
      %v501 = vadd.f32 %v320, %v500
      %v502 = vpop.f32.mrf.mxu0
      %503 = vmatprep.mubr.f32.mxu0 0.0
      %504 = vmatmul.mubr.f32.gmra.mxu0 %v336
      %v505 = vpop.f32.mrf.mxu0
      %v506 = vadd.f32 %v320, %v505
      %v507 = vpop.f32.mrf.mxu0
      %508 = vmatprep.mubr.f32.mxu0 0.0
      %509 = vmatmul.mubr.f32.gmra.mxu0 %v339
      %v510 = vpop.f32.mrf.mxu0
      %v511 = vadd.f32 %v320, %v510
      %v512 = vpop.f32.mrf.mxu0
      %513 = vmatprep.mubr.f32.mxu0 0.0
      %514 = vmatmul.mubr.f32.gmra.mxu0 %v342
      %v515 = vpop.f32.mrf.mxu0
      %v516 = vadd.f32 %v320, %v515
      %v517 = vpop.f32.mrf.mxu0
      %518 = vmatprep.mubr.f32.mxu0 0.0
      %519 = vmatmul.mubr.f32.gmra.mxu0 %v345
      %v520 = vpop.f32.mrf.mxu0
      %v521 = vadd.f32 %v320, %v520
      %v522 = vpop.f32.mrf.mxu0
      %523 = vmatprep.mubr.f32.mxu0 0.0
      %524 = vmatmul.mubr.f32.gmra.mxu0 %v348
      %v525 = vpop.f32.mrf.mxu0
      %v526 = vadd.f32 %v320, %v525
      %v527 = vpop.f32.mrf.mxu0
      %528 = vmatprep.mubr.f32.mxu0 0.0
      %529 = vmatmul.mubr.f32.gmra.mxu0 %v351
      %v530 = vpop.f32.mrf.mxu0
      %v531 = vadd.f32 %v320, %v530
      %v532 = vpop.f32.mrf.mxu0
      %533 = vmatprep.mubr.f32.mxu0 0.0
      %534 = vmatmul.mubr.f32.gmra.mxu0 %v354
      %v535 = vpop.f32.mrf.mxu0
      %v536 = vadd.f32 %v320, %v535
      %v537 = vpop.f32.mrf.mxu0
      %538 = vmatprep.mubr.f32.mxu0 0.0
      %539 = vmatmul.mubr.f32.gmra.mxu0 %v357
      %v540 = vpop.f32.mrf.mxu0
      %v541 = vadd.f32 %v320, %v540
      %v542 = vpop.f32.mrf.mxu0
      %543 = vmatprep.mubr.f32.mxu0 0.0
      %544 = vmatmul.mubr.f32.gmra.mxu0 %v360
      %v545 = vpop.f32.mrf.mxu0
      %v546 = vadd.f32 %v320, %v545
      %v547 = vpop.f32.mrf.mxu0
      %548 = vmatprep.mubr.f32.mxu0 0.0
      %549 = vmatmul.mubr.f32.gmra.mxu0 %v363
      %v550 = vpop.f32.mrf.mxu0
      %v551 = vadd.f32 %v320, %v550
      %v552 = vpop.f32.mrf.mxu0
      %553 = vmatprep.mubr.f32.mxu0 0.0
      %554 = vmatmul.mubr.f32.gmra.mxu0 %v366
      %v555 = vpop.f32.mrf.mxu0
      %v556 = vadd.f32 %v320, %v555
      %v557 = vpop.f32.mrf.mxu0
      %558 = vmatprep.mubr.f32.mxu0 0.0
      %559 = vmatmul.mubr.f32.gmra.mxu0 %v369
      %v560 = vpop.f32.mrf.mxu0
      %v561 = vadd.f32 %v320, %v560
      %v562 = vpop.f32.mrf.mxu0
      %563 = vmatprep.mubr.f32.mxu0 0.0
      %564 = vmatmul.mubr.f32.gmra.mxu0 %v372
      %v565 = vpop.f32.mrf.mxu0
      %v566 = vadd.f32 %v320, %v565
      %v567 = vpop.f32.mrf.mxu0
      %568 = vmatprep.mubr.f32.mxu0 0.0
      %569 = vmatmul.mubr.f32.gmra.mxu0 %v375
      %v570 = vpop.f32.mrf.mxu0
      %v571 = vadd.f32 %v320, %v570
      %v572 = vpop.f32.mrf.mxu0
      %573 = vmatprep.mubr.f32.mxu0 0.0
      %574 = vmatmul.mubr.f32.gmra.mxu0 %v378
      %v575 = vpop.f32.mrf.mxu0
      %v576 = vadd.f32 %v320, %v575
      %v577 = vpop.f32.mrf.mxu0
      %578 = vmatprep.mubr.f32.mxu0 0.0
      %579 = vmatmul.mubr.f32.gmra.mxu0 %v381
      %v580 = vpop.f32.mrf.mxu0
      %v581 = vadd.f32 %v320, %v580
      %v582 = vpop.f32.mrf.mxu0
      %583 = vmatprep.mubr.f32.mxu0 0.0
      %584 = vmatmul.mubr.f32.gmra.mxu0 %v384
      %v585 = vpop.f32.mrf.mxu0
      %v586 = vadd.f32 %v320, %v585
      %v587 = vpop.f32.mrf.mxu0
      %588 = vmatprep.mubr.f32.mxu0 0.0
      %589 = vmatmul.mubr.f32.gmra.mxu0 %v387
      %v590 = vpop.f32.mrf.mxu0
      %v591 = vadd.f32 %v320, %v590
      %v592 = vpop.f32.mrf.mxu0
      %593 = vmatprep.mubr.f32.mxu0 0.0
      %594 = vmatmul.mubr.f32.gmra.mxu0 %v390
      %v595 = vpop.f32.mrf.mxu0
      %v596 = vadd.f32 %v320, %v595
      %v597 = vpop.f32.mrf.mxu0
      %598 = vmatprep.mubr.f32.mxu0 0.0
      %599 = vmatmul.mubr.f32.gmra.mxu0 %v393
      %v600 = vpop.f32.mrf.mxu0
      %v601 = vadd.f32 %v320, %v600
      %v602 = vpop.f32.mrf.mxu0
      %603 = vmatprep.mubr.f32.mxu0 0.0
      %604 = vmatmul.mubr.f32.gmra.mxu0 %v396
      %v605 = vpop.f32.mrf.mxu0
      %v606 = vadd.f32 %v320, %v605
      %v607 = vpop.f32.mrf.mxu0
      %608 = vmatprep.mubr.f32.mxu0 0.0
      %609 = vmatmul.mubr.f32.gmra.mxu0 %v399
      %v610 = vpop.f32.mrf.mxu0
      %v611 = vadd.f32 %v320, %v610
      %v612 = vpop.f32.mrf.mxu0
      %613 = vmatprep.mubr.f32.mxu0 0.0
      %614 = vmatmul.mubr.f32.gmra.mxu0 %v402
      %v615 = vpop.f32.mrf.mxu0
      %v616 = vadd.f32 %v320, %v615
      %v617 = vpop.f32.mrf.mxu0
      %618 = vmatprep.mubr.f32.mxu0 0.0
      %619 = vmatmul.mubr.f32.gmra.mxu0 %v405
      %v620 = vpop.f32.mrf.mxu0
      %v621 = vadd.f32 %v320, %v620
      %v622 = vpop.f32.mrf.mxu0
      %623 = vmatprep.mubr.f32.mxu0 0.0
      %624 = vmatmul.mubr.f32.gmra.mxu0 %v408
      %v625 = vpop.f32.mrf.mxu0
      %v626 = vadd.f32 %v320, %v625
      %v627 = vpop.f32.mrf.mxu0
      %628 = vmatprep.mubr.f32.mxu0 0.0
      %629 = vmatmul.mubr.f32.gmra.mxu0 %v411
      %v630 = vpop.f32.mrf.mxu0
      %v631 = vadd.f32 %v320, %v630
      %v632 = vpop.f32.mrf.mxu0
      %633 = vmatprep.mubr.f32.mxu0 0.0
      %634 = vmatmul.mubr.f32.gmra.mxu0 %v414
      %v635 = vpop.f32.mrf.mxu0
      %v636 = vadd.f32 %v320, %v635
      %v637 = vpop.f32.mrf.mxu0
      %638 = vmatprep.mubr.f32.mxu0 0.0
      %639 = vmatmul.mubr.f32.gmra.mxu0 %v417
      %v640 = vpop.f32.mrf.mxu0
      %v641 = vadd.f32 %v320, %v640
      %v642 = vpop.f32.mrf.mxu0
      %643 = vdwg.mxu0
      %v644 = vmul.f32 %v486, 0.01
      %v645 = vmul.f32 %v491, 0.01
      %v646 = vmul.f32 %v496, 0.01
      %v647 = vmul.f32 %v501, 0.01
      %v648 = vmul.f32 %v506, 0.01
      %v649 = vmul.f32 %v511, 0.01
      %v650 = vmul.f32 %v516, 0.01
      %v651 = vmul.f32 %v521, 0.01
      %v652 = vmul.f32 %v526, 0.01
      %v653 = vmul.f32 %v531, 0.01
      %v654 = vmul.f32 %v536, 0.01
      %v655 = vmul.f32 %v541, 0.01
      %v656 = vmul.f32 %v546, 0.01
      %v657 = vmul.f32 %v551, 0.01
      %v658 = vmul.f32 %v556, 0.01
      %v659 = vmul.f32 %v561, 0.01
      %v660 = vmul.f32 %v566, 0.01
      %v661 = vmul.f32 %v571, 0.01
      %v662 = vmul.f32 %v576, 0.01
      %v663 = vmul.f32 %v581, 0.01
      %v664 = vmul.f32 %v586, 0.01
      %v665 = vmul.f32 %v591, 0.01
      %v666 = vmul.f32 %v596, 0.01
      %v667 = vmul.f32 %v601, 0.01
      %v668 = vmul.f32 %v606, 0.01
      %v669 = vmul.f32 %v611, 0.01
      %v670 = vmul.f32 %v616, 0.01
      %v671 = vmul.f32 %v621, 0.01
      %v672 = vmul.f32 %v626, 0.01
      %v673 = vmul.f32 %v631, 0.01
      %v674 = vmul.f32 %v636, 0.01
      %v675 = vmul.f32 %v641, 0.01
      %v676 = vmax.f32 %v486, %v644
      %v677 = vmax.f32 %v491, %v645
      %v678 = vmax.f32 %v496, %v646
      %v679 = vmax.f32 %v501, %v647
      %v680 = vmax.f32 %v506, %v648
      %v681 = vmax.f32 %v511, %v649
      %v682 = vmax.f32 %v516, %v650
      %v683 = vmax.f32 %v521, %v651
      %v684 = vmax.f32 %v526, %v652
      %v685 = vmax.f32 %v531, %v653
      %v686 = vmax.f32 %v536, %v654
      %v687 = vmax.f32 %v541, %v655
      %v688 = vmax.f32 %v546, %v656
      %v689 = vmax.f32 %v551, %v657
      %v690 = vmax.f32 %v556, %v658
      %v691 = vmax.f32 %v561, %v659
      %v692 = vmax.f32 %v566, %v660
      %v693 = vmax.f32 %v571, %v661
      %v694 = vmax.f32 %v576, %v662
      %v695 = vmax.f32 %v581, %v663
      %v696 = vmax.f32 %v586, %v664
      %v697 = vmax.f32 %v591, %v665
      %v698 = vmax.f32 %v596, %v666
      %v699 = vmax.f32 %v601, %v667
      %v700 = vmax.f32 %v606, %v668
      %v701 = vmax.f32 %v611, %v669
      %v702 = vmax.f32 %v616, %v670
      %v703 = vmax.f32 %v621, %v671
      %v704 = vmax.f32 %v626, %v672
      %v705 = vmax.f32 %v631, %v673
      %v706 = vmax.f32 %v636, %v674
      %v707 = vmax.f32 %v641, %v675
      %v708 = vld [vmem:[%s3] sm:$0xff]
      %v709 = vld [vmem:[%s3 + $0x8] sm:$0xff]
      %v710 = vld [vmem:[%s3 + $0x10] sm:$0xff]
      %v711 = vld [vmem:[%s3 + $0x18] sm:$0xff]
      %v712 = vld [vmem:[%s4] sm:$0x1]
      %v714 = vlaneseq
      %v715 = vshrl.u32 %v714, 7
      %v716 = vsub.s32 0, %v715
      %v717 = vrot.slane %v712, %v716
      %vm719 = vcmask 261120
      %v721 = vsel %vm719, %v676, 0
      %v724 = vsel %vm719, %v677, 0
      %v727 = vsel %vm719, %v678, 0
      %v730 = vsel %vm719, %v679, 0
      %v733 = vsel %vm719, %v680, 0
      %v736 = vsel %vm719, %v681, 0
      %v739 = vsel %vm719, %v682, 0
      %v742 = vsel %vm719, %v683, 0
      %v745 = vsel %vm719, %v684, 0
      %v748 = vsel %vm719, %v685, 0
      %v751 = vsel %vm719, %v686, 0
      %v754 = vsel %vm719, %v687, 0
      %v757 = vsel %vm719, %v688, 0
      %v760 = vsel %vm719, %v689, 0
      %v763 = vsel %vm719, %v690, 0
      %v766 = vsel %vm719, %v691, 0
      %v769 = vsel %vm719, %v692, 0
      %v772 = vsel %vm719, %v693, 0
      %v775 = vsel %vm719, %v694, 0
      %v778 = vsel %vm719, %v695, 0
      %v781 = vsel %vm719, %v696, 0
      %v784 = vsel %vm719, %v697, 0
      %v787 = vsel %vm719, %v698, 0
      %v790 = vsel %vm719, %v699, 0
      %v793 = vsel %vm719, %v700, 0
      %v796 = vsel %vm719, %v701, 0
      %v799 = vsel %vm719, %v702, 0
      %v802 = vsel %vm719, %v703, 0
      %v805 = vsel %vm719, %v704, 0
      %v808 = vsel %vm719, %v705, 0
      %v811 = vsel %vm719, %v706, 0
      %v814 = vsel %vm719, %v707, 0
      %816 = vmatprep.subr.mxu0 0.0
      %817 = vmatpush1.msra.mxu0 0.0
      %818 = vmatprep.subr.mxu0 0.0
      %819 = vmatpush1.msra.mxu0 0.0
      %820 = vmatprep.subr.mxu0 0.0
      %821 = vmatpush1.msra.mxu0 0.0
      %822 = vmatprep.subr.mxu0 0.0
      %823 = vmatpush1.msra.mxu0 0.0
      %824 = vmatprep.subr.mxu0 0.0
      %825 = vmatpush1.msra.mxu0 0.0
      %826 = vmatprep.subr.mxu0 0.0
      %827 = vmatpush1.msra.mxu0 0.0
      %828 = vmatprep.subr.mxu0 0.0
      %829 = vmatpush1.msra.mxu0 0.0
      %830 = vmatprep.subr.mxu0 0.0
      %831 = vmatpush1.msra.mxu0 0.0
      %832 = vmatprep.subr.mxu0 0.0
      %833 = vmatpush1.msra.mxu0 0.0
      %834 = vmatprep.subr.mxu0 0.0
      %835 = vmatpush1.msra.mxu0 0.0
      %836 = vmatprep.subr.mxu0 0.0
      %837 = vmatpush1.msra.mxu0 0.0
      %838 = vmatprep.subr.mxu0 0.0
      %839 = vmatpush1.msra.mxu0 0.0
      %840 = vmatprep.subr.mxu0 0.0
      %841 = vmatpush1.msra.mxu0 %v711
      %842 = vmatprep.subr.mxu0 0.0
      %843 = vmatpush1.msra.mxu0 %v710
      %844 = vmatprep.subr.mxu0 0.0
      %845 = vmatpush1.msra.mxu0 %v709
      %846 = vmatprep.subr.mxu0 0.0
      %847 = vmatpush1.msra.mxu0 %v708
      %848 = vmatprep.subr.mxu0 0.0
      %849 = vmatpush2.msra.mxu0 0.0
      %850 = vmatprep.subr.mxu0 0.0
      %851 = vmatpush2.msra.mxu0 0.0
      %852 = vmatprep.subr.mxu0 0.0
      %853 = vmatpush2.msra.mxu0 0.0
      %854 = vmatprep.subr.mxu0 0.0
      %855 = vmatpush2.msra.mxu0 0.0
      %856 = vmatprep.subr.mxu0 0.0
      %857 = vmatpush2.msra.mxu0 0.0
      %858 = vmatprep.subr.mxu0 0.0
      %859 = vmatpush2.msra.mxu0 0.0
      %860 = vmatprep.subr.mxu0 0.0
      %861 = vmatpush2.msra.mxu0 0.0
      %862 = vmatprep.subr.mxu0 0.0
      %863 = vmatpush2.msra.mxu0 0.0
      %864 = vmatprep.subr.mxu0 0.0
      %865 = vmatpush2.msra.mxu0 0.0
      %866 = vmatprep.subr.mxu0 0.0
      %867 = vmatpush2.msra.mxu0 0.0
      %868 = vmatprep.subr.mxu0 0.0
      %869 = vmatpush2.msra.mxu0 0.0
      %870 = vmatprep.subr.mxu0 0.0
      %871 = vmatpush2.msra.mxu0 0.0
      %872 = vmatprep.subr.mxu0 0.0
      %873 = vmatpush2.msra.mxu0 0.0
      %874 = vmatprep.subr.mxu0 0.0
      %875 = vmatpush2.msra.mxu0 0.0
      %876 = vmatprep.subr.mxu0 0.0
      %877 = vmatpush2.msra.mxu0 0.0
      %878 = vmatprep.subr.mxu0 0.0
      %879 = vmatpush2.msra.mxu0 0.0
      %880 = vmatprep.mubr.f32.mxu0 0.0
      %881 = vmatmul.mubr.f32.gmra.mxu0 %v721
      %v882 = vpop.f32.mrf.mxu0
      %v883 = vadd.f32 %v717, %v882
      %v884 = vpop.f32.mrf.mxu0
      %885 = vmatprep.mubr.f32.mxu0 0.0
      %886 = vmatmul.mubr.f32.gmra.mxu0 %v724
      %v887 = vpop.f32.mrf.mxu0
      %v888 = vadd.f32 %v717, %v887
      %v889 = vpop.f32.mrf.mxu0
      %890 = vmatprep.mubr.f32.mxu0 0.0
      %891 = vmatmul.mubr.f32.gmra.mxu0 %v727
      %v892 = vpop.f32.mrf.mxu0
      %v893 = vadd.f32 %v717, %v892
      %v894 = vpop.f32.mrf.mxu0
      %895 = vmatprep.mubr.f32.mxu0 0.0
      %896 = vmatmul.mubr.f32.gmra.mxu0 %v730
      %v897 = vpop.f32.mrf.mxu0
      %v898 = vadd.f32 %v717, %v897
      %v899 = vpop.f32.mrf.mxu0
      %900 = vmatprep.mubr.f32.mxu0 0.0
      %901 = vmatmul.mubr.f32.gmra.mxu0 %v733
      %v902 = vpop.f32.mrf.mxu0
      %v903 = vadd.f32 %v717, %v902
      %v904 = vpop.f32.mrf.mxu0
      %905 = vmatprep.mubr.f32.mxu0 0.0
      %906 = vmatmul.mubr.f32.gmra.mxu0 %v736
      %v907 = vpop.f32.mrf.mxu0
      %v908 = vadd.f32 %v717, %v907
      %v909 = vpop.f32.mrf.mxu0
      %910 = vmatprep.mubr.f32.mxu0 0.0
      %911 = vmatmul.mubr.f32.gmra.mxu0 %v739
      %v912 = vpop.f32.mrf.mxu0
      %v913 = vadd.f32 %v717, %v912
      %v914 = vpop.f32.mrf.mxu0
      %915 = vmatprep.mubr.f32.mxu0 0.0
      %916 = vmatmul.mubr.f32.gmra.mxu0 %v742
      %v917 = vpop.f32.mrf.mxu0
      %v918 = vadd.f32 %v717, %v917
      %v919 = vpop.f32.mrf.mxu0
      %920 = vmatprep.mubr.f32.mxu0 0.0
      %921 = vmatmul.mubr.f32.gmra.mxu0 %v745
      %v922 = vpop.f32.mrf.mxu0
      %v923 = vadd.f32 %v717, %v922
      %v924 = vpop.f32.mrf.mxu0
      %925 = vmatprep.mubr.f32.mxu0 0.0
      %926 = vmatmul.mubr.f32.gmra.mxu0 %v748
      %v927 = vpop.f32.mrf.mxu0
      %v928 = vadd.f32 %v717, %v927
      %v929 = vpop.f32.mrf.mxu0
      %930 = vmatprep.mubr.f32.mxu0 0.0
      %931 = vmatmul.mubr.f32.gmra.mxu0 %v751
      %v932 = vpop.f32.mrf.mxu0
      %v933 = vadd.f32 %v717, %v932
      %v934 = vpop.f32.mrf.mxu0
      %935 = vmatprep.mubr.f32.mxu0 0.0
      %936 = vmatmul.mubr.f32.gmra.mxu0 %v754
      %v937 = vpop.f32.mrf.mxu0
      %v938 = vadd.f32 %v717, %v937
      %v939 = vpop.f32.mrf.mxu0
      %940 = vmatprep.mubr.f32.mxu0 0.0
      %941 = vmatmul.mubr.f32.gmra.mxu0 %v757
      %v942 = vpop.f32.mrf.mxu0
      %v943 = vadd.f32 %v717, %v942
      %v944 = vpop.f32.mrf.mxu0
      %945 = vmatprep.mubr.f32.mxu0 0.0
      %946 = vmatmul.mubr.f32.gmra.mxu0 %v760
      %v947 = vpop.f32.mrf.mxu0
      %v948 = vadd.f32 %v717, %v947
      %v949 = vpop.f32.mrf.mxu0
      %950 = vmatprep.mubr.f32.mxu0 0.0
      %951 = vmatmul.mubr.f32.gmra.mxu0 %v763
      %v952 = vpop.f32.mrf.mxu0
      %v953 = vadd.f32 %v717, %v952
      %v954 = vpop.f32.mrf.mxu0
      %955 = vmatprep.mubr.f32.mxu0 0.0
      %956 = vmatmul.mubr.f32.gmra.mxu0 %v766
      %v957 = vpop.f32.mrf.mxu0
      %v958 = vadd.f32 %v717, %v957
      %v959 = vpop.f32.mrf.mxu0
      %960 = vmatprep.mubr.f32.mxu0 0.0
      %961 = vmatmul.mubr.f32.gmra.mxu0 %v769
      %v962 = vpop.f32.mrf.mxu0
      %v963 = vadd.f32 %v717, %v962
      %v964 = vpop.f32.mrf.mxu0
      %965 = vmatprep.mubr.f32.mxu0 0.0
      %966 = vmatmul.mubr.f32.gmra.mxu0 %v772
      %v967 = vpop.f32.mrf.mxu0
      %v968 = vadd.f32 %v717, %v967
      %v969 = vpop.f32.mrf.mxu0
      %970 = vmatprep.mubr.f32.mxu0 0.0
      %971 = vmatmul.mubr.f32.gmra.mxu0 %v775
      %v972 = vpop.f32.mrf.mxu0
      %v973 = vadd.f32 %v717, %v972
      %v974 = vpop.f32.mrf.mxu0
      %975 = vmatprep.mubr.f32.mxu0 0.0
      %976 = vmatmul.mubr.f32.gmra.mxu0 %v778
      %v977 = vpop.f32.mrf.mxu0
      %v978 = vadd.f32 %v717, %v977
      %v979 = vpop.f32.mrf.mxu0
      %980 = vmatprep.mubr.f32.mxu0 0.0
      %981 = vmatmul.mubr.f32.gmra.mxu0 %v781
      %v982 = vpop.f32.mrf.mxu0
      %v983 = vadd.f32 %v717, %v982
      %v984 = vpop.f32.mrf.mxu0
      %985 = vmatprep.mubr.f32.mxu0 0.0
      %986 = vmatmul.mubr.f32.gmra.mxu0 %v784
      %v987 = vpop.f32.mrf.mxu0
      %v988 = vadd.f32 %v717, %v987
      %v989 = vpop.f32.mrf.mxu0
      %990 = vmatprep.mubr.f32.mxu0 0.0
      %991 = vmatmul.mubr.f32.gmra.mxu0 %v787
      %v992 = vpop.f32.mrf.mxu0
      %v993 = vadd.f32 %v717, %v992
      %v994 = vpop.f32.mrf.mxu0
      %995 = vmatprep.mubr.f32.mxu0 0.0
      %996 = vmatmul.mubr.f32.gmra.mxu0 %v790
      %v997 = vpop.f32.mrf.mxu0
      %v998 = vadd.f32 %v717, %v997
      %v999 = vpop.f32.mrf.mxu0
      %1000 = vmatprep.mubr.f32.mxu0 0.0
      %1001 = vmatmul.mubr.f32.gmra.mxu0 %v793
      %v1002 = vpop.f32.mrf.mxu0
      %v1003 = vadd.f32 %v717, %v1002
      %v1004 = vpop.f32.mrf.mxu0
      %1005 = vmatprep.mubr.f32.mxu0 0.0
      %1006 = vmatmul.mubr.f32.gmra.mxu0 %v796
      %v1007 = vpop.f32.mrf.mxu0
      %v1008 = vadd.f32 %v717, %v1007
      %v1009 = vpop.f32.mrf.mxu0
      %1010 = vmatprep.mubr.f32.mxu0 0.0
      %1011 = vmatmul.mubr.f32.gmra.mxu0 %v799
      %v1012 = vpop.f32.mrf.mxu0
      %v1013 = vadd.f32 %v717, %v1012
      %v1014 = vpop.f32.mrf.mxu0
      %1015 = vmatprep.mubr.f32.mxu0 0.0
      %1016 = vmatmul.mubr.f32.gmra.mxu0 %v802
      %v1017 = vpop.f32.mrf.mxu0
      %v1018 = vadd.f32 %v717, %v1017
      %v1019 = vpop.f32.mrf.mxu0
      %1020 = vmatprep.mubr.f32.mxu0 0.0
      %1021 = vmatmul.mubr.f32.gmra.mxu0 %v805
      %v1022 = vpop.f32.mrf.mxu0
      %v1023 = vadd.f32 %v717, %v1022
      %v1024 = vpop.f32.mrf.mxu0
      %1025 = vmatprep.mubr.f32.mxu0 0.0
      %1026 = vmatmul.mubr.f32.gmra.mxu0 %v808
      %v1027 = vpop.f32.mrf.mxu0
      %v1028 = vadd.f32 %v717, %v1027
      %v1029 = vpop.f32.mrf.mxu0
      %1030 = vmatprep.mubr.f32.mxu0 0.0
      %1031 = vmatmul.mubr.f32.gmra.mxu0 %v811
      %v1032 = vpop.f32.mrf.mxu0
      %v1033 = vadd.f32 %v717, %v1032
      %v1034 = vpop.f32.mrf.mxu0
      %1035 = vmatprep.mubr.f32.mxu0 0.0
      %1036 = vmatmul.mubr.f32.gmra.mxu0 %v814
      %v1037 = vpop.f32.mrf.mxu0
      %v1038 = vadd.f32 %v717, %v1037
      %v1039 = vpop.f32.mrf.mxu0
      %1040 = vdwg.mxu0
      %v1041 = vmul.f32 %v883, 0.01
      %v1042 = vmul.f32 %v888, 0.01
      %v1043 = vmul.f32 %v893, 0.01
      %v1044 = vmul.f32 %v898, 0.01
      %v1045 = vmul.f32 %v903, 0.01
      %v1046 = vmul.f32 %v908, 0.01
      %v1047 = vmul.f32 %v913, 0.01
      %v1048 = vmul.f32 %v918, 0.01
      %v1049 = vmul.f32 %v923, 0.01
      %v1050 = vmul.f32 %v928, 0.01
      %v1051 = vmul.f32 %v933, 0.01
      %v1052 = vmul.f32 %v938, 0.01
      %v1053 = vmul.f32 %v943, 0.01
      %v1054 = vmul.f32 %v948, 0.01
      %v1055 = vmul.f32 %v953, 0.01
      %v1056 = vmul.f32 %v958, 0.01
      %v1057 = vmul.f32 %v963, 0.01
      %v1058 = vmul.f32 %v968, 0.01
      %v1059 = vmul.f32 %v973, 0.01
      %v1060 = vmul.f32 %v978, 0.01
      %v1061 = vmul.f32 %v983, 0.01
      %v1062 = vmul.f32 %v988, 0.01
      %v1063 = vmul.f32 %v993, 0.01
      %v1064 = vmul.f32 %v998, 0.01
      %v1065 = vmul.f32 %v1003, 0.01
      %v1066 = vmul.f32 %v1008, 0.01
      %v1067 = vmul.f32 %v1013, 0.01
      %v1068 = vmul.f32 %v1018, 0.01
      %v1069 = vmul.f32 %v1023, 0.01
      %v1070 = vmul.f32 %v1028, 0.01
      %v1071 = vmul.f32 %v1033, 0.01
      %v1072 = vmul.f32 %v1038, 0.01
      %v1073 = vmax.f32 %v883, %v1041
      %v1074 = vmax.f32 %v888, %v1042
      %v1075 = vmax.f32 %v893, %v1043
      %v1076 = vmax.f32 %v898, %v1044
      %v1077 = vmax.f32 %v903, %v1045
      %v1078 = vmax.f32 %v908, %v1046
      %v1079 = vmax.f32 %v913, %v1047
      %v1080 = vmax.f32 %v918, %v1048
      %v1081 = vmax.f32 %v923, %v1049
      %v1082 = vmax.f32 %v928, %v1050
      %v1083 = vmax.f32 %v933, %v1051
      %v1084 = vmax.f32 %v938, %v1052
      %v1085 = vmax.f32 %v943, %v1053
      %v1086 = vmax.f32 %v948, %v1054
      %v1087 = vmax.f32 %v953, %v1055
      %v1088 = vmax.f32 %v958, %v1056
      %v1089 = vmax.f32 %v963, %v1057
      %v1090 = vmax.f32 %v968, %v1058
      %v1091 = vmax.f32 %v973, %v1059
      %v1092 = vmax.f32 %v978, %v1060
      %v1093 = vmax.f32 %v983, %v1061
      %v1094 = vmax.f32 %v988, %v1062
      %v1095 = vmax.f32 %v993, %v1063
      %v1096 = vmax.f32 %v998, %v1064
      %v1097 = vmax.f32 %v1003, %v1065
      %v1098 = vmax.f32 %v1008, %v1066
      %v1099 = vmax.f32 %v1013, %v1067
      %v1100 = vmax.f32 %v1018, %v1068
      %v1101 = vmax.f32 %v1023, %v1069
      %v1102 = vmax.f32 %v1028, %v1070
      %v1103 = vmax.f32 %v1033, %v1071
      %v1104 = vmax.f32 %v1038, %v1072
      %v1105 = vld [vmem:[%s5] sm:$0xff]
      %v1106 = vld [vmem:[%s5 + $0x8] sm:$0xff]
      %v1107 = vld [vmem:[%s5 + $0x10] sm:$0xff]
      %v1108 = vld [vmem:[%s5 + $0x18] sm:$0xff]
      %v1109 = vld [vmem:[%s6] sm:$0x1]
      %v1111 = vlaneseq
      %v1112 = vshrl.u32 %v1111, 7
      %v1113 = vsub.s32 0, %v1112
      %v1114 = vrot.slane %v1109, %v1113
      %v1117 = vsel %vm719, %v1073, 0
      %v1120 = vsel %vm719, %v1074, 0
      %v1123 = vsel %vm719, %v1075, 0
      %v1126 = vsel %vm719, %v1076, 0
      %v1129 = vsel %vm719, %v1077, 0
      %v1132 = vsel %vm719, %v1078, 0
      %v1135 = vsel %vm719, %v1079, 0
      %v1138 = vsel %vm719, %v1080, 0
      %v1141 = vsel %vm719, %v1081, 0
      %v1144 = vsel %vm719, %v1082, 0
      %v1147 = vsel %vm719, %v1083, 0
      %v1150 = vsel %vm719, %v1084, 0
      %v1153 = vsel %vm719, %v1085, 0
      %v1156 = vsel %vm719, %v1086, 0
      %v1159 = vsel %vm719, %v1087, 0
      %v1162 = vsel %vm719, %v1088, 0
      %v1165 = vsel %vm719, %v1089, 0
      %v1168 = vsel %vm719, %v1090, 0
      %v1171 = vsel %vm719, %v1091, 0
      %v1174 = vsel %vm719, %v1092, 0
      %v1177 = vsel %vm719, %v1093, 0
      %v1180 = vsel %vm719, %v1094, 0
      %v1183 = vsel %vm719, %v1095, 0
      %v1186 = vsel %vm719, %v1096, 0
      %v1189 = vsel %vm719, %v1097, 0
      %v1192 = vsel %vm719, %v1098, 0
      %v1195 = vsel %vm719, %v1099, 0
      %v1198 = vsel %vm719, %v1100, 0
      %v1201 = vsel %vm719, %v1101, 0
      %v1204 = vsel %vm719, %v1102, 0
      %v1207 = vsel %vm719, %v1103, 0
      %v1210 = vsel %vm719, %v1104, 0
      %1212 = vmatprep.subr.mxu0 0.0
      %1213 = vmatpush1.msra.mxu0 0.0
      %1214 = vmatprep.subr.mxu0 0.0
      %1215 = vmatpush1.msra.mxu0 0.0
      %1216 = vmatprep.subr.mxu0 0.0
      %1217 = vmatpush1.msra.mxu0 0.0
      %1218 = vmatprep.subr.mxu0 0.0
      %1219 = vmatpush1.msra.mxu0 0.0
      %1220 = vmatprep.subr.mxu0 0.0
      %1221 = vmatpush1.msra.mxu0 0.0
      %1222 = vmatprep.subr.mxu0 0.0
      %1223 = vmatpush1.msra.mxu0 0.0
      %1224 = vmatprep.subr.mxu0 0.0
      %1225 = vmatpush1.msra.mxu0 0.0
      %1226 = vmatprep.subr.mxu0 0.0
      %1227 = vmatpush1.msra.mxu0 0.0
      %1228 = vmatprep.subr.mxu0 0.0
      %1229 = vmatpush1.msra.mxu0 0.0
      %1230 = vmatprep.subr.mxu0 0.0
      %1231 = vmatpush1.msra.mxu0 0.0
      %1232 = vmatprep.subr.mxu0 0.0
      %1233 = vmatpush1.msra.mxu0 0.0
      %1234 = vmatprep.subr.mxu0 0.0
      %1235 = vmatpush1.msra.mxu0 0.0
      %1236 = vmatprep.subr.mxu0 0.0
      %1237 = vmatpush1.msra.mxu0 %v1108
      %1238 = vmatprep.subr.mxu0 0.0
      %1239 = vmatpush1.msra.mxu0 %v1107
      %1240 = vmatprep.subr.mxu0 0.0
      %1241 = vmatpush1.msra.mxu0 %v1106
      %1242 = vmatprep.subr.mxu0 0.0
      %1243 = vmatpush1.msra.mxu0 %v1105
      %1244 = vmatprep.subr.mxu0 0.0
      %1245 = vmatpush2.msra.mxu0 0.0
      %1246 = vmatprep.subr.mxu0 0.0
      %1247 = vmatpush2.msra.mxu0 0.0
      %1248 = vmatprep.subr.mxu0 0.0
      %1249 = vmatpush2.msra.mxu0 0.0
      %1250 = vmatprep.subr.mxu0 0.0
      %1251 = vmatpush2.msra.mxu0 0.0
      %1252 = vmatprep.subr.mxu0 0.0
      %1253 = vmatpush2.msra.mxu0 0.0
      %1254 = vmatprep.subr.mxu0 0.0
      %1255 = vmatpush2.msra.mxu0 0.0
      %1256 = vmatprep.subr.mxu0 0.0
      %1257 = vmatpush2.msra.mxu0 0.0
      %1258 = vmatprep.subr.mxu0 0.0
      %1259 = vmatpush2.msra.mxu0 0.0
      %1260 = vmatprep.subr.mxu0 0.0
      %1261 = vmatpush2.msra.mxu0 0.0
      %1262 = vmatprep.subr.mxu0 0.0
      %1263 = vmatpush2.msra.mxu0 0.0
      %1264 = vmatprep.subr.mxu0 0.0
      %1265 = vmatpush2.msra.mxu0 0.0
      %1266 = vmatprep.subr.mxu0 0.0
      %1267 = vmatpush2.msra.mxu0 0.0
      %1268 = vmatprep.subr.mxu0 0.0
      %1269 = vmatpush2.msra.mxu0 0.0
      %1270 = vmatprep.subr.mxu0 0.0
      %1271 = vmatpush2.msra.mxu0 0.0
      %1272 = vmatprep.subr.mxu0 0.0
      %1273 = vmatpush2.msra.mxu0 0.0
      %1274 = vmatprep.subr.mxu0 0.0
      %1275 = vmatpush2.msra.mxu0 0.0
      %1276 = vmatprep.mubr.f32.mxu0 0.0
      %1277 = vmatmul.mubr.f32.gmra.mxu0 %v1117
      %v1278 = vpop.f32.mrf.mxu0
      %v1279 = vadd.f32 %v1114, %v1278
      %v1280 = vpop.f32.mrf.mxu0
      %1281 = vmatprep.mubr.f32.mxu0 0.0
      %1282 = vmatmul.mubr.f32.gmra.mxu0 %v1120
      %v1283 = vpop.f32.mrf.mxu0
      %v1284 = vadd.f32 %v1114, %v1283
      %v1285 = vpop.f32.mrf.mxu0
      %1286 = vmatprep.mubr.f32.mxu0 0.0
      %1287 = vmatmul.mubr.f32.gmra.mxu0 %v1123
      %v1288 = vpop.f32.mrf.mxu0
      %v1289 = vadd.f32 %v1114, %v1288
      %v1290 = vpop.f32.mrf.mxu0
      %1291 = vmatprep.mubr.f32.mxu0 0.0
      %1292 = vmatmul.mubr.f32.gmra.mxu0 %v1126
      %v1293 = vpop.f32.mrf.mxu0
      %v1294 = vadd.f32 %v1114, %v1293
      %v1295 = vpop.f32.mrf.mxu0
      %1296 = vmatprep.mubr.f32.mxu0 0.0
      %1297 = vmatmul.mubr.f32.gmra.mxu0 %v1129
      %v1298 = vpop.f32.mrf.mxu0
      %v1299 = vadd.f32 %v1114, %v1298
      %v1300 = vpop.f32.mrf.mxu0
      %1301 = vmatprep.mubr.f32.mxu0 0.0
      %1302 = vmatmul.mubr.f32.gmra.mxu0 %v1132
      %v1303 = vpop.f32.mrf.mxu0
      %v1304 = vadd.f32 %v1114, %v1303
      %v1305 = vpop.f32.mrf.mxu0
      %1306 = vmatprep.mubr.f32.mxu0 0.0
      %1307 = vmatmul.mubr.f32.gmra.mxu0 %v1135
      %v1308 = vpop.f32.mrf.mxu0
      %v1309 = vadd.f32 %v1114, %v1308
      %v1310 = vpop.f32.mrf.mxu0
      %1311 = vmatprep.mubr.f32.mxu0 0.0
      %1312 = vmatmul.mubr.f32.gmra.mxu0 %v1138
      %v1313 = vpop.f32.mrf.mxu0
      %v1314 = vadd.f32 %v1114, %v1313
      %v1315 = vpop.f32.mrf.mxu0
      %1316 = vmatprep.mubr.f32.mxu0 0.0
      %1317 = vmatmul.mubr.f32.gmra.mxu0 %v1141
      %v1318 = vpop.f32.mrf.mxu0
      %v1319 = vadd.f32 %v1114, %v1318
      %v1320 = vpop.f32.mrf.mxu0
      %1321 = vmatprep.mubr.f32.mxu0 0.0
      %1322 = vmatmul.mubr.f32.gmra.mxu0 %v1144
      %v1323 = vpop.f32.mrf.mxu0
      %v1324 = vadd.f32 %v1114, %v1323
      %v1325 = vpop.f32.mrf.mxu0
      %1326 = vmatprep.mubr.f32.mxu0 0.0
      %1327 = vmatmul.mubr.f32.gmra.mxu0 %v1147
      %v1328 = vpop.f32.mrf.mxu0
      %v1329 = vadd.f32 %v1114, %v1328
      %v1330 = vpop.f32.mrf.mxu0
      %1331 = vmatprep.mubr.f32.mxu0 0.0
      %1332 = vmatmul.mubr.f32.gmra.mxu0 %v1150
      %v1333 = vpop.f32.mrf.mxu0
      %v1334 = vadd.f32 %v1114, %v1333
      %v1335 = vpop.f32.mrf.mxu0
      %1336 = vmatprep.mubr.f32.mxu0 0.0
      %1337 = vmatmul.mubr.f32.gmra.mxu0 %v1153
      %v1338 = vpop.f32.mrf.mxu0
      %v1339 = vadd.f32 %v1114, %v1338
      %v1340 = vpop.f32.mrf.mxu0
      %1341 = vmatprep.mubr.f32.mxu0 0.0
      %1342 = vmatmul.mubr.f32.gmra.mxu0 %v1156
      %v1343 = vpop.f32.mrf.mxu0
      %v1344 = vadd.f32 %v1114, %v1343
      %v1345 = vpop.f32.mrf.mxu0
      %1346 = vmatprep.mubr.f32.mxu0 0.0
      %1347 = vmatmul.mubr.f32.gmra.mxu0 %v1159
      %v1348 = vpop.f32.mrf.mxu0
      %v1349 = vadd.f32 %v1114, %v1348
      %v1350 = vpop.f32.mrf.mxu0
      %1351 = vmatprep.mubr.f32.mxu0 0.0
      %1352 = vmatmul.mubr.f32.gmra.mxu0 %v1162
      %v1353 = vpop.f32.mrf.mxu0
      %v1354 = vadd.f32 %v1114, %v1353
      %v1355 = vpop.f32.mrf.mxu0
      %1356 = vmatprep.mubr.f32.mxu0 0.0
      %1357 = vmatmul.mubr.f32.gmra.mxu0 %v1165
      %v1358 = vpop.f32.mrf.mxu0
      %v1359 = vadd.f32 %v1114, %v1358
      %v1360 = vpop.f32.mrf.mxu0
      %1361 = vmatprep.mubr.f32.mxu0 0.0
      %1362 = vmatmul.mubr.f32.gmra.mxu0 %v1168
      %v1363 = vpop.f32.mrf.mxu0
      %v1364 = vadd.f32 %v1114, %v1363
      %v1365 = vpop.f32.mrf.mxu0
      %1366 = vmatprep.mubr.f32.mxu0 0.0
      %1367 = vmatmul.mubr.f32.gmra.mxu0 %v1171
      %v1368 = vpop.f32.mrf.mxu0
      %v1369 = vadd.f32 %v1114, %v1368
      %v1370 = vpop.f32.mrf.mxu0
      %1371 = vmatprep.mubr.f32.mxu0 0.0
      %1372 = vmatmul.mubr.f32.gmra.mxu0 %v1174
      %v1373 = vpop.f32.mrf.mxu0
      %v1374 = vadd.f32 %v1114, %v1373
      %v1375 = vpop.f32.mrf.mxu0
      %1376 = vmatprep.mubr.f32.mxu0 0.0
      %1377 = vmatmul.mubr.f32.gmra.mxu0 %v1177
      %v1378 = vpop.f32.mrf.mxu0
      %v1379 = vadd.f32 %v1114, %v1378
      %v1380 = vpop.f32.mrf.mxu0
      %1381 = vmatprep.mubr.f32.mxu0 0.0
      %1382 = vmatmul.mubr.f32.gmra.mxu0 %v1180
      %v1383 = vpop.f32.mrf.mxu0
      %v1384 = vadd.f32 %v1114, %v1383
      %v1385 = vpop.f32.mrf.mxu0
      %1386 = vmatprep.mubr.f32.mxu0 0.0
      %1387 = vmatmul.mubr.f32.gmra.mxu0 %v1183
      %v1388 = vpop.f32.mrf.mxu0
      %v1389 = vadd.f32 %v1114, %v1388
      %v1390 = vpop.f32.mrf.mxu0
      %1391 = vmatprep.mubr.f32.mxu0 0.0
      %1392 = vmatmul.mubr.f32.gmra.mxu0 %v1186
      %v1393 = vpop.f32.mrf.mxu0
      %v1394 = vadd.f32 %v1114, %v1393
      %v1395 = vpop.f32.mrf.mxu0
      %1396 = vmatprep.mubr.f32.mxu0 0.0
      %1397 = vmatmul.mubr.f32.gmra.mxu0 %v1189
      %v1398 = vpop.f32.mrf.mxu0
      %v1399 = vadd.f32 %v1114, %v1398
      %v1400 = vpop.f32.mrf.mxu0
      %1401 = vmatprep.mubr.f32.mxu0 0.0
      %1402 = vmatmul.mubr.f32.gmra.mxu0 %v1192
      %v1403 = vpop.f32.mrf.mxu0
      %v1404 = vadd.f32 %v1114, %v1403
      %v1405 = vpop.f32.mrf.mxu0
      %1406 = vmatprep.mubr.f32.mxu0 0.0
      %1407 = vmatmul.mubr.f32.gmra.mxu0 %v1195
      %v1408 = vpop.f32.mrf.mxu0
      %v1409 = vadd.f32 %v1114, %v1408
      %v1410 = vpop.f32.mrf.mxu0
      %1411 = vmatprep.mubr.f32.mxu0 0.0
      %1412 = vmatmul.mubr.f32.gmra.mxu0 %v1198
      %v1413 = vpop.f32.mrf.mxu0
      %v1414 = vadd.f32 %v1114, %v1413
      %v1415 = vpop.f32.mrf.mxu0
      %1416 = vmatprep.mubr.f32.mxu0 0.0
      %1417 = vmatmul.mubr.f32.gmra.mxu0 %v1201
      %v1418 = vpop.f32.mrf.mxu0
      %v1419 = vadd.f32 %v1114, %v1418
      %v1420 = vpop.f32.mrf.mxu0
      %1421 = vmatprep.mubr.f32.mxu0 0.0
      %1422 = vmatmul.mubr.f32.gmra.mxu0 %v1204
      %v1423 = vpop.f32.mrf.mxu0
      %v1424 = vadd.f32 %v1114, %v1423
      %v1425 = vpop.f32.mrf.mxu0
      %1426 = vmatprep.mubr.f32.mxu0 0.0
      %1427 = vmatmul.mubr.f32.gmra.mxu0 %v1207
      %v1428 = vpop.f32.mrf.mxu0
      %v1429 = vadd.f32 %v1114, %v1428
      %v1430 = vpop.f32.mrf.mxu0
      %1431 = vmatprep.mubr.f32.mxu0 0.0
      %1432 = vmatmul.mubr.f32.gmra.mxu0 %v1210
      %v1433 = vpop.f32.mrf.mxu0
      %v1434 = vadd.f32 %v1114, %v1433
      %v1435 = vpop.f32.mrf.mxu0
      %1436 = vdwg.mxu0
      %vm1437 = vcmask 31744
      %1438 = vst.msk [vmem:[%s280] sm:$0xff] %vm1437, %v1279
      %1439 = vst.msk [vmem:[%s280 + $0x8] sm:$0xff] %vm1437, %v1284
      %1440 = vst.msk [vmem:[%s280 + $0x10] sm:$0xff] %vm1437, %v1289
      %1441 = vst.msk [vmem:[%s280 + $0x18] sm:$0xff] %vm1437, %v1294
      %1442 = vst.msk [vmem:[%s280 + $0x20] sm:$0xff] %vm1437, %v1299
      %1443 = vst.msk [vmem:[%s280 + $0x28] sm:$0xff] %vm1437, %v1304
      %1444 = vst.msk [vmem:[%s280 + $0x30] sm:$0xff] %vm1437, %v1309
      %1445 = vst.msk [vmem:[%s280 + $0x38] sm:$0xff] %vm1437, %v1314
      %1446 = vst.msk [vmem:[%s280 + $0x40] sm:$0xff] %vm1437, %v1319
      %1447 = vst.msk [vmem:[%s280 + $0x48] sm:$0xff] %vm1437, %v1324
      %1448 = vst.msk [vmem:[%s280 + $0x50] sm:$0xff] %vm1437, %v1329
      %1449 = vst.msk [vmem:[%s280 + $0x58] sm:$0xff] %vm1437, %v1334
      %1450 = vst.msk [vmem:[%s280 + $0x60] sm:$0xff] %vm1437, %v1339
      %1451 = vst.msk [vmem:[%s280 + $0x68] sm:$0xff] %vm1437, %v1344
      %1452 = vst.msk [vmem:[%s280 + $0x70] sm:$0xff] %vm1437, %v1349
      %1453 = vst.msk [vmem:[%s280 + $0x78] sm:$0xff] %vm1437, %v1354
      %1454 = vst.msk [vmem:[%s280 + $0x80] sm:$0xff] %vm1437, %v1359
      %1455 = vst.msk [vmem:[%s280 + $0x88] sm:$0xff] %vm1437, %v1364
      %1456 = vst.msk [vmem:[%s280 + $0x90] sm:$0xff] %vm1437, %v1369
      %1457 = vst.msk [vmem:[%s280 + $0x98] sm:$0xff] %vm1437, %v1374
      %1458 = vst.msk [vmem:[%s280 + $0xa0] sm:$0xff] %vm1437, %v1379
      %1459 = vst.msk [vmem:[%s280 + $0xa8] sm:$0xff] %vm1437, %v1384
      %1460 = vst.msk [vmem:[%s280 + $0xb0] sm:$0xff] %vm1437, %v1389
      %1461 = vst.msk [vmem:[%s280 + $0xb8] sm:$0xff] %vm1437, %v1394
      %1462 = vst.msk [vmem:[%s280 + $0xc0] sm:$0xff] %vm1437, %v1399
      %1463 = vst.msk [vmem:[%s280 + $0xc8] sm:$0xff] %vm1437, %v1404
      %1464 = vst.msk [vmem:[%s280 + $0xd0] sm:$0xff] %vm1437, %v1409
      %1465 = vst.msk [vmem:[%s280 + $0xd8] sm:$0xff] %vm1437, %v1414
      %1466 = vst.msk [vmem:[%s280 + $0xe0] sm:$0xff] %vm1437, %v1419
      %1467 = vst.msk [vmem:[%s280 + $0xe8] sm:$0xff] %vm1437, %v1424
      %1468 = vst.msk [vmem:[%s280 + $0xf0] sm:$0xff] %vm1437, %v1429
      %1469 = vst.msk [vmem:[%s280 + $0xf8] sm:$0xff] %vm1437, %v1434
      %s1470 = smul.u32 32, %s18
      %p1471 = scmp.lt.s32.totalorder %s1470, 63
      %s1472 = scalar_select %p1471, %s1470, 63
      %s1473 = smul.addr %s1472, 8
      %s1474 = scalar_lea.vmem %s7, %s1473
      // Predicated region
      $region49: #{mlp_forward.1} parent=47 // pred_check
        %p1475 = pneg %p188
      $region50: #{mlp_forward.1} parent=47 // pred_check_branch
        %1477 = sbr.rel (%p1475) target = $region52
      $region51: #{mlp_forward.1} parent=47 // pred_region
        %s1478 = smul.u32 32, %s18
      $region52: #{mlp_forward.1} parent=47 // pred_fallthru
        _
    $region48: #{mlp_forward.1} parent=5 // pred_fallthru
      _
    %p1479 = scmp.le.s32.totalorder 2, %s13
    // Predicated region
    $region53: #{mlp_forward.1} parent=5 // pred_check
      %p1480 = pneg %p1479
    $region54: #{mlp_forward.1} parent=5 // pred_check_branch
      %1482 = sbr.rel (%p1480) target = $region56
    $region55: #{mlp_forward.1} parent=5 // pred_region
      %s1483 = ssub.s32 %s13, 2
      // Predicated region
      $region57: #{mlp_forward.1} parent=55 // pred_check
        %p1484 = pneg %p194
      $region58: #{mlp_forward.1} parent=55 // pred_check_branch
        %1486 = sbr.rel (%p1484) target = $region60
      $region59: #{mlp_forward.1} parent=55 // pred_region
        %s1487 = smul.u32 32, %s19
        %p1488 = scmp.lt.s32.totalorder %s1487, 63
        %s1489 = scalar_select %p1488, %s1487, 63
        %s1490 = smul.addr %s1489, 8
        %s1491 = scalar_lea.vmem %s7, %s1490
      $region60: #{mlp_forward.1} parent=55 // pred_fallthru
        _
    $region56: #{mlp_forward.1} parent=5 // pred_fallthru
      _
  $region6: #{mlp_forward.1} parent=0 // loop_footer
    %s17 = sadd.s32 1, %s13
  $region7: #{mlp_forward.1} parent=0 // loop_footer_branch
    %12 = sbr.rel target = $region3
  $region8: #{mlp_forward.1} parent=0 // loop_exit
    _

</llo_original>
